<compile_context>
chip_gen: v6e
topology: v6e:2x2x1
jax: 0.10.0
libtpu: 0.0.40
codegen_flags: <defaults>
</compile_context>

<pallas_src>
import functools

import jax
import jax.numpy as jnp
from jax.experimental import pallas as pl
from jax.experimental.pallas import tpu as pltpu


def _ffn_kernel(x_ref, w1_ref, b1_ref, w2_ref, b2_ref, o_ref, acc_ref):
    # x_ref:  (tm, C)   w1_ref: (C, th)   b1_ref: (1, th)
    # w2_ref: (th, C)   b2_ref: (1, C)    o_ref:  (tm, C)
    # acc_ref: (tm, C) f32 scratch, resident across the H (reduction) axis.
    k = pl.program_id(1)

    # First matmul: native-dtype operands, f32 MXU accumulation.
    h = jnp.dot(x_ref[...], w1_ref[...], preferred_element_type=jnp.float32)
    h = jnp.maximum(h + b1_ref[...].astype(jnp.float32), 0.0)  # bias + ReLU

    # Second matmul: cast activation to the weight dtype (bf16 path when the
    # weights are bf16), accumulate in f32.
    part = jnp.dot(h.astype(w2_ref.dtype), w2_ref[...],
                   preferred_element_type=jnp.float32)

    @pl.when(k == 0)
    def _first():                   # write-through: no zero-store + readback
        acc_ref[...] = part

    @pl.when(k > 0)
    def _accum():
        acc_ref[...] += part

    @pl.when(k == pl.num_programs(1) - 1)
    def _finalize():                # single lane-dense store, b2 in epilogue
        o_ref[...] = (acc_ref[...] + b2_ref[...].astype(jnp.float32)
                      ).astype(o_ref.dtype)


def _round_up(x, m):
    return ((x + m - 1) // m) * m


def _vmem_capacity_bytes():
    # Physical VMEM per core: 128 MiB on v5e/v6e, 64 MiB per TC on v7x.
    try:
        cap = int(getattr(pltpu.get_tpu_info(), "vmem_capacity_bytes", 0))
        if cap > 0:
            return cap
    except Exception:
        pass
    return 64 * 2**20  # conservative fallback (v7x-sized)


def _vmem_need_bytes(tm, th, c, x_bytes, w_bytes):
    # Double-buffered in/out tiles (BlockSpec pipelining) + f32 accumulator.
    return (2 * tm * c * x_bytes          # x row tile
            + 2 * c * th * w_bytes        # W1 H-tile
            + 2 * th * c * w_bytes        # W2 H-tile
            + 2 * (th + c) * w_bytes      # b1 / b2 tiles
            + 2 * tm * c * x_bytes        # out row tile
            + tm * c * 4)                 # f32 accumulator scratch


def _pick_tiles(m, c, h, x_bytes, w_bytes, vmem_budget):
    """Pick (tm, th).

    Maximize the row tile tm — weight HBM traffic scales as M/tm, and
    flops-per-weight-byte as 2*tm/itemsize — subject to the per-generation
    VMEM budget, while keeping >= 2 row tiles when there is enough work so
    the "parallel" grid axis occupies both TensorCores on v7x.
    """
    # Hidden-dim tile: largest of {512, 256, 128} that divides H
    # (lane-aligned weight tiles); fall back to the full dim otherwise.
    th_cands = [t for t in (512, 256, 128) if h % t == 0] or [h]

    if m <= 256:
        # Whole-M row tile equals the full array dim: always a legal block
        # shape, single row tile, no host-side padding needed.
        return m, th_cands[0]

    tm_cap = max(256, _round_up(pl.cdiv(m, 2), 256))   # keep >= 2 row tiles
    tm_cands = [t for t in (1024, 768, 512, 256, 128, 64, 32) if t <= tm_cap]

    best = None
    for th in th_cands:
        for tm in tm_cands:  # descending: first fit is the largest tm
            if _vmem_need_bytes(tm, th, c, x_bytes, w_bytes) <= vmem_budget:
                if best is None or (tm, th) > best:
                    best = (tm, th)
                break
    return best if best is not None else (32, th_cands[-1])


@functools.partial(jax.jit, static_argnames=("tm", "th", "vmem_limit"))
def _ffn_impl(x, w1, b1, w2, b2, *, tm, th, vmem_limit):
    B, T, C = x.shape
    H = w1.shape[1]
    M = B * T

    x2d = x.reshape(M, C)
    b1_2d = b1.reshape(1, H)
    b2_2d = b2.reshape(1, C)

    m_tiles = pl.cdiv(M, tm)   # ragged last row tile handled by Pallas
    h_tiles = pl.cdiv(H, th)   # th divides H by construction (or th == H)

    # Honest HBM traffic: W1/W2 are re-streamed once per row tile.
    flops = 4 * M * C * H
    bytes_accessed = int(
        M * C * x.dtype.itemsize                          # x in
        + m_tiles * (C * H + H) * w1.dtype.itemsize       # W1, b1 re-streamed
        + m_tiles * (H * C + C) * w2.dtype.itemsize       # W2, b2 re-streamed
        + M * C * x.dtype.itemsize)                       # out

    # NOTE: production shapes should have C a multiple of 128 (lane-dense
    # output stores); sub-128 C works but pays masked vst.msk stores.
    out2d = pl.pallas_call(
        _ffn_kernel,
        out_shape=jax.ShapeDtypeStruct((M, C), x.dtype),
        grid_spec=pltpu.PrefetchScalarGridSpec(
            num_scalar_prefetch=0,
            grid=(m_tiles, h_tiles),                      # reduction axis last
            in_specs=[
                pl.BlockSpec((tm, C), lambda i, k: (i, 0)),   # x row tile
                pl.BlockSpec((C, th), lambda i, k: (0, k)),   # W1 H-tile
                pl.BlockSpec((1, th), lambda i, k: (0, k)),   # b1 H-tile
                pl.BlockSpec((th, C), lambda i, k: (k, 0)),   # W2 H-tile
                pl.BlockSpec((1, C), lambda i, k: (0, 0)),    # b2 (invariant)
            ],
            out_specs=pl.BlockSpec((tm, C), lambda i, k: (i, 0)),
            scratch_shapes=[pltpu.VMEM((tm, C), jnp.float32)],
        ),
        compiler_params=pltpu.CompilerParams(
            dimension_semantics=("parallel", "arbitrary"),
            vmem_limit_bytes=vmem_limit),
        cost_estimate=pl.CostEstimate(flops=flops, transcendentals=0,
                                      bytes_accessed=bytes_accessed),
    )(x2d, w1, b1_2d, w2, b2_2d)

    return out2d.reshape(B, T, C)


def feedforward(x, w1, b1, w2, b2):
    """x: (B, T, C). Returns (B, T, C). Inference-mode forward (Dropout = id)."""
    B, T, C = x.shape
    H = w1.shape[1]
    M = B * T

    x_bytes = x.dtype.itemsize
    w_bytes = w1.dtype.itemsize

    cap = _vmem_capacity_bytes()
    budget = int(cap * 0.70)                      # tile-selection budget
    tm, th = _pick_tiles(M, C, H, x_bytes, w_bytes, budget)

    need = _vmem_need_bytes(tm, th, C, x_bytes, w_bytes)
    # ~20% physical headroom: ~102 MiB on v5e/v6e (128 MiB), ~51 MiB on v7x.
    vmem_limit = int(min(cap * 0.80, max(need + (8 << 20), 32 << 20)))

    return _ffn_impl(x, w1, b1, w2, b2, tm=tm, th=th, vmem_limit=vmem_limit)


def init_params(key, n_embd, dtype=jnp.float32):
    """Deterministic init matching nn.Linear shapes (uniform +/- 1/sqrt(fan_in))."""
    hidden = 4 * n_embd
    k1, k2, k3, k4 = jax.random.split(key, 4)
    lim1 = 1.0 / jnp.sqrt(n_embd)
    lim2 = 1.0 / jnp.sqrt(hidden)
    # stored as (in_features, out_features) = transpose of torch's (out, in)
    w1 = jax.random.uniform(k1, (n_embd, hidden), dtype, -lim1, lim1)
    b1 = jax.random.uniform(k2, (hidden,), dtype, -lim1, lim1)
    w2 = jax.random.uniform(k3, (hidden, n_embd), dtype, -lim2, lim2)
    b2 = jax.random.uniform(k4, (n_embd,), dtype, -lim2, lim2)
    return w1, b1, w2, b2


if __name__ == "__main__":
    key = jax.random.PRNGKey(0)
    kx, kp = jax.random.split(key)

    B, T, n_embd = 2, 8, 32      # hidden = 4 * n_embd = 128
    dropout = 0.1                # identity at inference

    x = jax.random.normal(kx, (B, T, n_embd), jnp.float32)
    w1, b1, w2, b2 = init_params(kp, n_embd)

    out = feedforward(x, w1, b1, w2, b2)
    out = jax.block_until_ready(out)

    # sanity check against plain-JAX reference
    ref = jnp.maximum(x.reshape(-1, n_embd) @ w1 + b1, 0.0) @ w2 + b2
    ref = ref.reshape(B, T, n_embd)
    assert out.shape == (B, T, n_embd)
    assert jnp.allclose(out, ref, atol=1e-5, rtol=1e-5)

    print("KERNEL_OK")
</pallas_src>

<mosaic_0001>
module attributes {stable_mosaic.version = 11 : i64} {
  func.func @_ffn_kernel(%arg0: i32, %arg1: i32, %arg2: memref<16x32xf32, #tpu.memory_space<vmem>>, %arg3: memref<32x128xf32, #tpu.memory_space<vmem>>, %arg4: memref<1x128xf32, #tpu.memory_space<vmem>>, %arg5: memref<128x32xf32, #tpu.memory_space<vmem>>, %arg6: memref<1x32xf32, #tpu.memory_space<vmem>>, %arg7: memref<16x32xf32, #tpu.memory_space<vmem>>, %arg8: memref<16x32xf32, #tpu.memory_space<vmem>>) attributes {dimension_semantics = [#tpu.dimension_semantics<parallel>, #tpu.dimension_semantics<arbitrary>], iteration_bounds = array<i64: 1, 1>, scalar_prefetch = 0 : i64, scratch_operands = 1 : i64, tpu.core_type = #tpu.core_type<tc>, window_params = [{transform_indices = @transform_0, window_bounds = array<i64: 16, 32>}, {transform_indices = @transform_1, window_bounds = array<i64: 32, 128>}, {transform_indices = @transform_2, window_bounds = array<i64: 1, 128>}, {transform_indices = @transform_3, window_bounds = array<i64: 128, 32>}, {pipeline_mode = #tpu.pipeline_mode<synchronous>, transform_indices = @transform_4, window_bounds = array<i64: 1, 32>}, {transform_indices = @transform_5, window_bounds = array<i64: 16, 32>}]} {
    %c0 = arith.constant 0 : index
    %c0_0 = arith.constant 0 : index
    %0 = vector.load %arg2[%c0, %c0_0] : memref<16x32xf32, #tpu.memory_space<vmem>>, vector<16x32xf32>
    %c0_1 = arith.constant 0 : index
    %c0_2 = arith.constant 0 : index
    %1 = vector.load %arg3[%c0_1, %c0_2] : memref<32x128xf32, #tpu.memory_space<vmem>>, vector<32x128xf32>
    %cst = arith.constant dense<0.000000e+00> : vector<16x128xf32>
    %2 = tpu.matmul %0, %1, %cst {dimension_numbers = #tpu.dot_dimension_numbers<[1], [0], [0], [1], [0, 0, 1, 1], [], []>} : vector<16x32xf32>, vector<32x128xf32>, vector<16x128xf32> -> vector<16x128xf32>
    %c0_3 = arith.constant 0 : index
    %c0_4 = arith.constant 0 : index
    %3 = vector.load %arg4[%c0_3, %c0_4] : memref<1x128xf32, #tpu.memory_space<vmem>>, vector<1x128xf32>
    %4 = vector.broadcast %3 : vector<1x128xf32> to vector<16x128xf32>
    %5 = arith.addf %2, %4 : vector<16x128xf32>
    %cst_5 = arith.constant 0.000000e+00 : f32
    %6 = vector.broadcast %cst_5 : f32 to vector<16x128xf32>
    %7 = arith.maximumf %5, %6 : vector<16x128xf32>
    %c0_6 = arith.constant 0 : index
    %c0_7 = arith.constant 0 : index
    %8 = vector.load %arg5[%c0_6, %c0_7] : memref<128x32xf32, #tpu.memory_space<vmem>>, vector<128x32xf32>
    %cst_8 = arith.constant dense<0.000000e+00> : vector<16x32xf32>
    %9 = tpu.matmul %7, %8, %cst_8 {dimension_numbers = #tpu.dot_dimension_numbers<[1], [0], [0], [1], [0, 0, 1, 1], [], []>} : vector<16x128xf32>, vector<128x32xf32>, vector<16x32xf32> -> vector<16x32xf32>
    %c0_i32 = arith.constant 0 : i32
    %10 = arith.cmpi eq, %arg1, %c0_i32 : i32
    %11 = arith.extui %10 : i1 to i32
    %c0_i32_9 = arith.constant 0 : i32
    %12 = arith.cmpi ne, %11, %c0_i32_9 : i32
    scf.if %12 {
      %c0_14 = arith.constant 0 : index
      %c0_15 = arith.constant 0 : index
      %19 = vector.load %arg8[%c0_14, %c0_15] : memref<16x32xf32, #tpu.memory_space<vmem>>, vector<16x32xf32>
      tpu.vector_store %arg8[%c0_14, %c0_15], %9 {strides = array<i32>} : memref<16x32xf32, #tpu.memory_space<vmem>>, vector<16x32xf32>,
    } else {
    }
    %c0_i32_10 = arith.constant 0 : i32
    %13 = arith.cmpi sgt, %arg1, %c0_i32_10 : i32
    %14 = arith.extui %13 : i1 to i32
    %c0_i32_11 = arith.constant 0 : i32
    %15 = arith.cmpi ne, %14, %c0_i32_11 : i32
    scf.if %15 {
      %c0_14 = arith.constant 0 : index
      %c0_15 = arith.constant 0 : index
      %19 = vector.load %arg8[%c0_14, %c0_15] : memref<16x32xf32, #tpu.memory_space<vmem>>, vector<16x32xf32>
      %20 = arith.addf %19, %9 : vector<16x32xf32>
      %c0_16 = arith.constant 0 : index
      %c0_17 = arith.constant 0 : index
      %21 = vector.load %arg8[%c0_16, %c0_17] : memref<16x32xf32, #tpu.memory_space<vmem>>, vector<16x32xf32>
      tpu.vector_store %arg8[%c0_16, %c0_17], %20 {strides = array<i32>} : memref<16x32xf32, #tpu.memory_space<vmem>>, vector<16x32xf32>,
    } else {
    }
    %c0_i32_12 = arith.constant 0 : i32
    %16 = arith.cmpi eq, %arg1, %c0_i32_12 : i32
    %17 = arith.extui %16 : i1 to i32
    %c0_i32_13 = arith.constant 0 : i32
    %18 = arith.cmpi ne, %17, %c0_i32_13 : i32
    scf.if %18 {
      %c0_14 = arith.constant 0 : index
      %c0_15 = arith.constant 0 : index
      %19 = vector.load %arg8[%c0_14, %c0_15] : memref<16x32xf32, #tpu.memory_space<vmem>>, vector<16x32xf32>
      %c0_16 = arith.constant 0 : index
      %c0_17 = arith.constant 0 : index
      %20 = vector.load %arg6[%c0_16, %c0_17] : memref<1x32xf32, #tpu.memory_space<vmem>>, vector<1x32xf32>
      %21 = vector.broadcast %20 : vector<1x32xf32> to vector<16x32xf32>
      %22 = arith.addf %19, %21 : vector<16x32xf32>
      %c0_18 = arith.constant 0 : index
      %c0_19 = arith.constant 0 : index
      %23 = vector.load %arg7[%c0_18, %c0_19] : memref<16x32xf32, #tpu.memory_space<vmem>>, vector<16x32xf32>
      tpu.vector_store %arg7[%c0_18, %c0_19], %22 {strides = array<i32>} : memref<16x32xf32, #tpu.memory_space<vmem>>, vector<16x32xf32>,
    } else {
    }
    return
  }
  func.func @transform_0(%arg0: i32, %arg1: i32) -> (i32, i32) {
    %c0_i32 = arith.constant 0 : i32
    %c0_i32_0 = arith.constant 0 : i32
    return %arg0, %c0_i32 : i32, i32
  }
  func.func @transform_1(%arg0: i32, %arg1: i32) -> (i32, i32) {
    %c0_i32 = arith.constant 0 : i32
    %c0_i32_0 = arith.constant 0 : i32
    return %c0_i32, %arg1 : i32, i32
  }
  func.func @transform_2(%arg0: i32, %arg1: i32) -> (i32, i32) {
    %c0_i32 = arith.constant 0 : i32
    %c0_i32_0 = arith.constant 0 : i32
    return %c0_i32, %arg1 : i32, i32
  }
  func.func @transform_3(%arg0: i32, %arg1: i32) -> (i32, i32) {
    %c0_i32 = arith.constant 0 : i32
    %c0_i32_0 = arith.constant 0 : i32
    return %arg1, %c0_i32 : i32, i32
  }
  func.func @transform_4(%arg0: i32, %arg1: i32) -> (i32, i32) {
    %c0_i32 = arith.constant 0 : i32
    %c0_i32_0 = arith.constant 0 : i32
    %c0_i32_1 = arith.constant 0 : i32
    return %c0_i32, %c0_i32_0 : i32, i32
  }
  func.func @transform_5(%arg0: i32, %arg1: i32) -> (i32, i32) {
    %c0_i32 = arith.constant 0 : i32
    %c0_i32_0 = arith.constant 0 : i32
    return %arg0, %c0_i32 : i32, i32
  }
}

</mosaic_0001>

<llo_original>
// kernel: _ffn_impl.1
$region0: #{_ffn_impl.1}
  #allocation0 [shape = 'u32[]', space=smem, size = 0x4, offset = 0x4, fixed_abs, tag = 'smem constant byte address 0x4 - core index']
  #allocation1 [shape = 'u32[144,128]{1,0:T(1,128)}', space=vmem, size = 0x12000, scoped, tag = 'internal scratch']
  #allocation2 [shape = 'f32[16,32]{1,0:T(8,128)}', space=vmem, size = 0x2000, scoped, tag = 'scratch operand']
  %s0 = inlined_call_operand.vmem [shape: f32[16,32], index: 0, kind: input, shape index: {}]
  %s1 = inlined_call_operand.vmem [shape: f32[32,128], index: 1, kind: input, shape index: {}]
  %s2 = inlined_call_operand.vmem [shape: f32[1,128], index: 2, kind: input, shape index: {}]
  %s3 = inlined_call_operand.vmem [shape: f32[128,32], index: 3, kind: input, shape index: {}]
  %s4 = inlined_call_operand.vmem [shape: f32[1,32], index: 4, kind: input, shape index: {}]
  %s5 = inlined_call_operand.hbm [shape: f32[16,32], index: 5, kind: output, shape index: {}]
  %s6 = sld [smem:[#allocation0]]
  $region42: #{_ffn_impl.1} parent=0
    _
  %s8 = ssub.s32 1, %s6
  %s9 = scalar_select 0, %s8, %s6
  $region1: #{_ffn_impl.1} parent=0
    #allocation3 [shape = 'u8[8192]{0}', space=vmem, size = 0x2000, scoped, tag = 'output window, operand 0, single buffered']
    #allocation4 [shape = 's32[1]{0}', space=sflag, size = 0x4, scoped, tag = 'scoped memory for _ffn_impl.1']
    %10 = vsyncpa [#allocation4], 0
    // Predicated region
    $region2: #{_ffn_impl.1} parent=1 // pred_check
      _
    $region3: #{_ffn_impl.1} parent=1 // pred_check_branch
      %12 = sbr.rel (0) target = $region5
    $region4: #{_ffn_impl.1} parent=1 // pred_region
      _
    $region5: #{_ffn_impl.1} parent=1 // pred_fallthru
      _
    // Predicated region
    $region6: #{_ffn_impl.1} parent=1 // pred_check
      _
    $region7: #{_ffn_impl.1} parent=1 // pred_check_branch
      %14 = sbr.rel (0) target = $region9
    $region8: #{_ffn_impl.1} parent=1 // pred_region
      _
    $region9: #{_ffn_impl.1} parent=1 // pred_fallthru
      _
    // Predicated region
    $region10: #{_ffn_impl.1} parent=1 // pred_check
      _
    $region11: #{_ffn_impl.1} parent=1 // pred_check_branch
      %16 = sbr.rel (0) target = $region13
    $region12: #{_ffn_impl.1} parent=1 // pred_region
      _
    $region13: #{_ffn_impl.1} parent=1 // pred_fallthru
      _
    // Predicated region
    $region14: #{_ffn_impl.1} parent=1 // pred_check
      _
    $region15: #{_ffn_impl.1} parent=1 // pred_check_branch
      %18 = sbr.rel (0) target = $region17
    $region16: #{_ffn_impl.1} parent=1 // pred_region
      _
    $region17: #{_ffn_impl.1} parent=1 // pred_fallthru
      _
    // Predicated region
    $region18: #{_ffn_impl.1} parent=1 // pred_check
      _
    $region19: #{_ffn_impl.1} parent=1 // pred_check_branch
      %20 = sbr.rel (0) target = $region21
    $region20: #{_ffn_impl.1} parent=1 // pred_region
      _
    $region21: #{_ffn_impl.1} parent=1 // pred_fallthru
      _
    %v21 = vld [vmem:[%s0] sm:$0xff]
    %v22 = vld [vmem:[%s0 + $0x8] sm:$0xff]
    %v23 = vld [vmem:[%s1] sm:$0xff]
    %v24 = vld [vmem:[%s1 + $0x8] sm:$0xff]
    %v25 = vld [vmem:[%s1 + $0x10] sm:$0xff]
    %v26 = vld [vmem:[%s1 + $0x18] sm:$0xff]
    %v27 = vld [vmem:[%s2] sm:$0x1]
    %v29 = vlaneseq
    %v30 = vshrl.u32 %v29, 7
    %v31 = vsub.s32 0, %v30
    %v32 = vrot.slane %v27, %v31
    %vm34 = vcmask 261120
    %v36 = vsel %vm34, %v21, 0
    %v39 = vsel %vm34, %v22, 0
    %41 = vmatprep.subr.mxu0 0.0
    %42 = vmatpush1.msra.mxu0 0.0
    %43 = vmatprep.subr.mxu0 0.0
    %44 = vmatpush1.msra.mxu0 0.0
    %45 = vmatprep.subr.mxu0 0.0
    %46 = vmatpush1.msra.mxu0 0.0
    %47 = vmatprep.subr.mxu0 0.0
    %48 = vmatpush1.msra.mxu0 0.0
    %49 = vmatprep.subr.mxu0 0.0
    %50 = vmatpush1.msra.mxu0 0.0
    %51 = vmatprep.subr.mxu0 0.0
    %52 = vmatpush1.msra.mxu0 0.0
    %53 = vmatprep.subr.mxu0 0.0
    %54 = vmatpush1.msra.mxu0 0.0
    %55 = vmatprep.subr.mxu0 0.0
    %56 = vmatpush1.msra.mxu0 0.0
    %57 = vmatprep.subr.mxu0 0.0
    %58 = vmatpush1.msra.mxu0 0.0
    %59 = vmatprep.subr.mxu0 0.0
    %60 = vmatpush1.msra.mxu0 0.0
    %61 = vmatprep.subr.mxu0 0.0
    %62 = vmatpush1.msra.mxu0 0.0
    %63 = vmatprep.subr.mxu0 0.0
    %64 = vmatpush1.msra.mxu0 0.0
    %65 = vmatprep.subr.mxu0 0.0
    %66 = vmatpush1.msra.mxu0 %v26
    %67 = vmatprep.subr.mxu0 0.0
    %68 = vmatpush1.msra.mxu0 %v25
    %69 = vmatprep.subr.mxu0 0.0
    %70 = vmatpush1.msra.mxu0 %v24
    %71 = vmatprep.subr.mxu0 0.0
    %72 = vmatpush1.msra.mxu0 %v23
    %73 = vmatprep.subr.mxu0 0.0
    %74 = vmatpush2.msra.mxu0 0.0
    %75 = vmatprep.subr.mxu0 0.0
    %76 = vmatpush2.msra.mxu0 0.0
    %77 = vmatprep.subr.mxu0 0.0
    %78 = vmatpush2.msra.mxu0 0.0
    %79 = vmatprep.subr.mxu0 0.0
    %80 = vmatpush2.msra.mxu0 0.0
    %81 = vmatprep.subr.mxu0 0.0
    %82 = vmatpush2.msra.mxu0 0.0
    %83 = vmatprep.subr.mxu0 0.0
    %84 = vmatpush2.msra.mxu0 0.0
    %85 = vmatprep.subr.mxu0 0.0
    %86 = vmatpush2.msra.mxu0 0.0
    %87 = vmatprep.subr.mxu0 0.0
    %88 = vmatpush2.msra.mxu0 0.0
    %89 = vmatprep.subr.mxu0 0.0
    %90 = vmatpush2.msra.mxu0 0.0
    %91 = vmatprep.subr.mxu0 0.0
    %92 = vmatpush2.msra.mxu0 0.0
    %93 = vmatprep.subr.mxu0 0.0
    %94 = vmatpush2.msra.mxu0 0.0
    %95 = vmatprep.subr.mxu0 0.0
    %96 = vmatpush2.msra.mxu0 0.0
    %97 = vmatprep.subr.mxu0 0.0
    %98 = vmatpush2.msra.mxu0 0.0
    %99 = vmatprep.subr.mxu0 0.0
    %100 = vmatpush2.msra.mxu0 0.0
    %101 = vmatprep.subr.mxu0 0.0
    %102 = vmatpush2.msra.mxu0 0.0
    %103 = vmatprep.subr.mxu0 0.0
    %104 = vmatpush2.msra.mxu0 0.0
    %105 = vmatprep.mubr.f32.mxu0 0.0
    %106 = vmatmul.mubr.f32.gmra.mxu0 %v36
    %v107 = vpop.f32.mrf.mxu0
    %v108 = vadd.f32 %v32, %v107
    %v109 = vpop.f32.mrf.mxu0
    %110 = vmatprep.mubr.f32.mxu0 0.0
    %111 = vmatmul.mubr.f32.gmra.mxu0 %v39
    %v112 = vpop.f32.mrf.mxu0
    %v113 = vadd.f32 %v32, %v112
    %v114 = vpop.f32.mrf.mxu0
    %115 = vdwg.mxu0
    %v116 = vmax.f32 %v108, 0.0
    %v117 = vmax.f32 %v113, 0.0
    %v118 = vld [vmem:[%s3] sm:$0xff]
    %v119 = vld [vmem:[%s3 + $0x8] sm:$0xff]
    %v120 = vld [vmem:[%s3 + $0x10] sm:$0xff]
    %v121 = vld [vmem:[%s3 + $0x18] sm:$0xff]
    %v122 = vld [vmem:[%s3 + $0x20] sm:$0xff]
    %v123 = vld [vmem:[%s3 + $0x28] sm:$0xff]
    %v124 = vld [vmem:[%s3 + $0x30] sm:$0xff]
    %v125 = vld [vmem:[%s3 + $0x38] sm:$0xff]
    %v126 = vld [vmem:[%s3 + $0x40] sm:$0xff]
    %v127 = vld [vmem:[%s3 + $0x48] sm:$0xff]
    %v128 = vld [vmem:[%s3 + $0x50] sm:$0xff]
    %v129 = vld [vmem:[%s3 + $0x58] sm:$0xff]
    %v130 = vld [vmem:[%s3 + $0x60] sm:$0xff]
    %v131 = vld [vmem:[%s3 + $0x68] sm:$0xff]
    %v132 = vld [vmem:[%s3 + $0x70] sm:$0xff]
    %v133 = vld [vmem:[%s3 + $0x78] sm:$0xff]
    %134 = vmatprep.subr.mxu0 0.0
    %135 = vmatpush1.msra.mxu0 %v133
    %136 = vmatprep.subr.mxu0 0.0
    %137 = vmatpush1.msra.mxu0 %v132
    %138 = vmatprep.subr.mxu0 0.0
    %139 = vmatpush1.msra.mxu0 %v131
    %140 = vmatprep.subr.mxu0 0.0
    %141 = vmatpush1.msra.mxu0 %v130
    %142 = vmatprep.subr.mxu0 0.0
    %143 = vmatpush1.msra.mxu0 %v129
    %144 = vmatprep.subr.mxu0 0.0
    %145 = vmatpush1.msra.mxu0 %v128
    %146 = vmatprep.subr.mxu0 0.0
    %147 = vmatpush1.msra.mxu0 %v127
    %148 = vmatprep.subr.mxu0 0.0
    %149 = vmatpush1.msra.mxu0 %v126
    %150 = vmatprep.subr.mxu0 0.0
    %151 = vmatpush1.msra.mxu0 %v125
    %152 = vmatprep.subr.mxu0 0.0
    %153 = vmatpush1.msra.mxu0 %v124
    %154 = vmatprep.subr.mxu0 0.0
    %155 = vmatpush1.msra.mxu0 %v123
    %156 = vmatprep.subr.mxu0 0.0
    %157 = vmatpush1.msra.mxu0 %v122
    %158 = vmatprep.subr.mxu0 0.0
    %159 = vmatpush1.msra.mxu0 %v121
    %160 = vmatprep.subr.mxu0 0.0
    %161 = vmatpush1.msra.mxu0 %v120
    %162 = vmatprep.subr.mxu0 0.0
    %163 = vmatpush1.msra.mxu0 %v119
    %164 = vmatprep.subr.mxu0 0.0
    %165 = vmatpush1.msra.mxu0 %v118
    %166 = vmatprep.subr.mxu0 0.0
    %167 = vmatpush2.msra.mxu0 0.0
    %168 = vmatprep.subr.mxu0 0.0
    %169 = vmatpush2.msra.mxu0 0.0
    %170 = vmatprep.subr.mxu0 0.0
    %171 = vmatpush2.msra.mxu0 0.0
    %172 = vmatprep.subr.mxu0 0.0
    %173 = vmatpush2.msra.mxu0 0.0
    %174 = vmatprep.subr.mxu0 0.0
    %175 = vmatpush2.msra.mxu0 0.0
    %176 = vmatprep.subr.mxu0 0.0
    %177 = vmatpush2.msra.mxu0 0.0
    %178 = vmatprep.subr.mxu0 0.0
    %179 = vmatpush2.msra.mxu0 0.0
    %180 = vmatprep.subr.mxu0 0.0
    %181 = vmatpush2.msra.mxu0 0.0
    %182 = vmatprep.subr.mxu0 0.0
    %183 = vmatpush2.msra.mxu0 0.0
    %184 = vmatprep.subr.mxu0 0.0
    %185 = vmatpush2.msra.mxu0 0.0
    %186 = vmatprep.subr.mxu0 0.0
    %187 = vmatpush2.msra.mxu0 0.0
    %188 = vmatprep.subr.mxu0 0.0
    %189 = vmatpush2.msra.mxu0 0.0
    %190 = vmatprep.subr.mxu0 0.0
    %191 = vmatpush2.msra.mxu0 0.0
    %192 = vmatprep.subr.mxu0 0.0
    %193 = vmatpush2.msra.mxu0 0.0
    %194 = vmatprep.subr.mxu0 0.0
    %195 = vmatpush2.msra.mxu0 0.0
    %196 = vmatprep.subr.mxu0 0.0
    %197 = vmatpush2.msra.mxu0 0.0
    %198 = vmatprep.mubr.f32.mxu0 0.0
    %199 = vmatmul.mubr.f32.gmra.mxu0 %v116
    %v200 = vpop.f32.mrf.mxu0
    %v201 = vadd.f32 0.0, %v200
    %v202 = vpop.f32.mrf.mxu0
    %203 = vmatprep.mubr.f32.mxu0 0.0
    %204 = vmatmul.mubr.f32.gmra.mxu0 %v117
    %v205 = vpop.f32.mrf.mxu0
    %v206 = vadd.f32 0.0, %v205
    %v207 = vpop.f32.mrf.mxu0
    %208 = vdwg.mxu0
    %p209 = scmp.eq.s32.totalorder 0, 0
    // Predicated region
    $region22: #{_ffn_impl.1} parent=1 // pred_check
      %p210 = pneg %p209
    $region23: #{_ffn_impl.1} parent=1 // pred_check_branch
      %212 = sbr.rel (%p210) target = $region25
    $region24: #{_ffn_impl.1} parent=1 // pred_region
      %213 = vst.msk [vmem:[#allocation2] sm:$0xff] %vm34, %v201
      %214 = vst.msk [vmem:[#allocation2 + $0x8] sm:$0xff] %vm34, %v206
    $region25: #{_ffn_impl.1} parent=1 // pred_fallthru
      _
    %p215 = scmp.gt.s32.totalorder 0, 0
    // Predicated region
    $region26: #{_ffn_impl.1} parent=1 // pred_check
      %p216 = pneg %p215
    $region27: #{_ffn_impl.1} parent=1 // pred_check_branch
      %218 = sbr.rel (%p216) target = $region29
    $region28: #{_ffn_impl.1} parent=1 // pred_region
      %v219 = vld [vmem:[#allocation2] sm:$0xff]
      %v220 = vld [vmem:[#allocation2 + $0x8] sm:$0xff]
      %v221 = vadd.f32 %v219, %v201
      %v222 = vadd.f32 %v220, %v206
      %223 = vst.msk [vmem:[#allocation2] sm:$0xff] %vm34, %v221
      %224 = vst.msk [vmem:[#allocation2 + $0x8] sm:$0xff] %vm34, %v222
    $region29: #{_ffn_impl.1} parent=1 // pred_fallthru
      _
    // Predicated region
    $region30: #{_ffn_impl.1} parent=1 // pred_check
      %p225 = pneg %p209
    $region31: #{_ffn_impl.1} parent=1 // pred_check_branch
      %227 = sbr.rel (%p225) target = $region33
    $region32: #{_ffn_impl.1} parent=1 // pred_region
      %v228 = vld [vmem:[#allocation2] sm:$0xff]
      %v229 = vld [vmem:[#allocation2 + $0x8] sm:$0xff]
      %v230 = vld [vmem:[%s4] sm:$0x1]
      %v232 = vlaneseq
      %v233 = vshrl.u32 %v232, 7
      %v234 = vsub.s32 0, %v233
      %v235 = vrot.slane %v230, %v234
      %v237 = vadd.f32 %v228, %v235
      %v238 = vadd.f32 %v229, %v235
      %239 = vst.msk [vmem:[#allocation3] sm:$0xff] %vm34, %v237
      %240 = vst.msk [vmem:[#allocation3 + $0x8] sm:$0xff] %vm34, %v238
    $region33: #{_ffn_impl.1} parent=1 // pred_fallthru
      _
    // Predicated region
    $region34: #{_ffn_impl.1} parent=1 // pred_check
      _
    $region35: #{_ffn_impl.1} parent=1 // pred_check_branch
      %242 = sbr.rel (0) target = $region37
    $region36: #{_ffn_impl.1} parent=1 // pred_region
      %s244 = ssub.s32 256, 256
      %245 = vsyncadd [#allocation4], %s244
      %s246 = sshll.u32 [#allocation3], 4
      %s247 = int_to_ptr.vmem [resolvable:$true] %s246
      %252 = dma.vmem_to_hbm [thread:$0]  %s247, 256, %s5, [#allocation4], 128, 128, 8
    $region37: #{_ffn_impl.1} parent=1 // pred_fallthru
      _
    // Predicated region
    $region38: #{_ffn_impl.1} parent=1 // pred_check
      _
    $region39: #{_ffn_impl.1} parent=1 // pred_check_branch
      %254 = sbr.rel (0) target = $region41
    $region40: #{_ffn_impl.1} parent=1 // pred_region
      %255 = dma.done [#allocation4], 256
    $region41: #{_ffn_impl.1} parent=1 // pred_fallthru
      _
    %256 = vsyncpa [#allocation4], 1

</llo_original>
